<compile_context>
chip_gen: v5e
topology: v5e:2x2
jax: 0.10.0
libtpu: 0.0.40
codegen_flags: <defaults>
</compile_context>

<pallas_src>
import functools

import jax
import jax.numpy as jnp
from jax import lax
from jax.experimental import pallas as pl
from jax.experimental.pallas import tpu as pltpu

_LANE = 128


def _round_up(x, mult):
    return ((x + mult - 1) // mult) * mult


def _vmem_capacity_bytes():
    try:
        return int(pltpu.get_tpu_info().vmem_capacity_bytes)
    except Exception:
        return 64 * 1024 * 1024  # conservative (v7x-sized) fallback


def _plan_k_tiling(m, k, elem_bytes, tile_k=None):
    """Per-generation K-tile size and scoped-VMEM limit."""
    if _vmem_capacity_bytes() >= 100 * 1024 * 1024:   # v5e / v6e: 128 MiB VMEM
        vmem_limit, max_tk = 64 * 1024 * 1024, 8192
    else:                                              # v7x: 64 MiB VMEM
        vmem_limit, max_tk = 32 * 1024 * 1024, 2048

    # Resident VMEM: double-buffered (m, m) f32 output slab + a minimal
    # double-buffered feature panel must fit the scoped limit.
    resident = 2 * m * m * 4
    if resident + 2 * m * _LANE * elem_bytes > vmem_limit:
        # TODO(synk): add an (M x M)-tiled output fallback for very large N*C.
        raise NotImplementedError(
            f"N*C={m} too large for a VMEM-resident Gram accumulator")

    if k <= _LANE:
        return k, vmem_limit          # single full-extent tile

    if tile_k is not None:            # explicit override (testing / tuning)
        tk = min(_round_up(tile_k, _LANE), _round_up(k, _LANE))
        return tk, vmem_limit

    stream_budget = max(2 * m * _LANE * elem_bytes,
                        vmem_limit - resident - 2 * 1024 * 1024)
    tk = (stream_budget // (2 * m * elem_bytes) // _LANE) * _LANE
    tk = int(max(_LANE, min(tk, max_tk, _round_up(k, _LANE))))
    return tk, vmem_limit


# --------------------------------------------------------------------------- #
# Partial (unscaled) Gram: K streamed + split over a parallel grid axis
# --------------------------------------------------------------------------- #
def _gram_partial_kernel(feat_ref, g_ref, *, k, tk, kps, needs_mask,
                         compute_dtype):
    i = pl.program_id(0)   # K-split index ("parallel": sharded across TCs)
    kk = pl.program_id(1)  # K-tile index within the split ("arbitrary")

    @pl.when(kk == 0)
    def _():
        g_ref[...] = jnp.zeros_like(g_ref)

    tile = feat_ref[...]
    if needs_mask:
        # Zero columns past K (un-padded input) and the duplicate clamped tiles
        # introduced by rounding the per-split tile count.
        rem = k - (i * kps + kk) * tk
        col = lax.broadcasted_iota(jnp.int32, (1, tk), 1)
        tile = jnp.where(col < rem, tile, jnp.zeros_like(tile))
    if compute_dtype is not None and tile.dtype != compute_dtype:
        tile = tile.astype(compute_dtype)   # in-kernel cast: no extra HBM pass

    # F_tile @ F_tile^T by contracting the last dim of both operands
    # (natural A.B^T MXU form, f32 accumulation into the resident output).
    g_ref[...] += lax.dot_general(
        tile, tile,
        dimension_numbers=(((1,), (1,)), ((), ())),
        preferred_element_type=jnp.float32)


def _gram_partial(x, compute_dtype=None, tile_k=None):
    """Returns (num_splits, M, M) f32 partial slabs; sum over axis 0 == F @ F^T."""
    n, c, h, w = x.shape
    m, k = n * c, h * w
    feats = x.reshape(m, k)                       # metadata reshape only
    elem_bytes = jnp.dtype(feats.dtype).itemsize
    tk, vmem_limit = _plan_k_tiling(m, k, elem_bytes, tile_k)

    num_k = pl.cdiv(k, tk)
    num_splits = 2 if num_k >= 4 else 1           # share K across (up to 2) TCs
    kps = pl.cdiv(num_k, num_splits)
    needs_mask = (num_splits * kps * tk) != k

    if num_splits * kps == num_k:
        feat_idx = lambda i, kk: (0, i * kps + kk)
    else:
        # Clamp the duplicate trailing tiles of the last split; they are fully
        # zero-masked inside the kernel, so they contribute nothing.
        last = num_k - 1
        feat_idx = lambda i, kk: (0, jnp.minimum(i * kps + kk, last))

    kernel = functools.partial(
        _gram_partial_kernel, k=k, tk=tk, kps=kps,
        needs_mask=needs_mask, compute_dtype=compute_dtype)

    return pl.pallas_call(
        kernel,
        out_shape=jax.ShapeDtypeStruct((num_splits, m, m), jnp.float32),
        grid=(num_splits, kps),
        in_specs=[pl.BlockSpec((m, tk), feat_idx)],
        out_specs=pl.BlockSpec((None, m, m), lambda i, kk: (i, 0, 0)),
        compiler_params=pltpu.CompilerParams(
            dimension_semantics=("parallel", "arbitrary"),
            vmem_limit_bytes=vmem_limit),
        cost_estimate=pl.CostEstimate(
            flops=2 * m * m * k,
            transcendentals=0,
            bytes_accessed=m * k * elem_bytes + num_splits * m * m * 4),
    )(feats)


def gram_matrix_pallas(x, compute_dtype=None, tile_k=None):
    """x: (N, C, H, W) -> gram matrix (N*C, N*C) / (N*C*H*W), float32."""
    n, c, h, w = x.shape
    partial = _gram_partial(x, compute_dtype, tile_k)
    g = partial[0] if partial.shape[0] == 1 else partial.sum(axis=0)
    return g * (1.0 / float(n * c * h * w))


# --------------------------------------------------------------------------- #
# Finalize: sum partial slabs, scale, MSE against target (tiny, one grid step)
# --------------------------------------------------------------------------- #
def _finalize_kernel(partial_ref, target_ref, g_ref, loss_ref, *,
                     inv_denom, inv_mm):
    g = jnp.sum(partial_ref[...], axis=0) * inv_denom
    g_ref[...] = g
    diff = g - target_ref[...]
    loss_ref[0] = jnp.sum(diff * diff) * inv_mm


def _finalize(partial, target, denom):
    s, m, _ = partial.shape
    kernel = functools.partial(
        _finalize_kernel, inv_denom=1.0 / float(denom),
        inv_mm=1.0 / float(m * m))
    g, loss = pl.pallas_call(
        kernel,
        out_shape=(jax.ShapeDtypeStruct((m, m), jnp.float32),
                   jax.ShapeDtypeStruct((1,), jnp.float32)),
        grid=(1,),
        in_specs=[pl.BlockSpec((s, m, m), lambda i: (0, 0, 0)),
                  pl.BlockSpec((m, m), lambda i: (0, 0))],
        out_specs=(pl.BlockSpec((m, m), lambda i: (0, 0)),
                   pl.BlockSpec(memory_space=pltpu.MemorySpace.SMEM)),
    )(partial, target.astype(jnp.float32))
    return g, loss[0]


class StyleLoss:
    """JAX/Pallas equivalent of the PyTorch StyleLoss module (forward only)."""

    def __init__(self, target_feature, compute_dtype=None):
        self.compute_dtype = compute_dtype
        # target gram is precomputed ("detached") at construction time
        self.target = gram_matrix_pallas(target_feature, compute_dtype)
        self.loss = None
        self.G = None

    def forward(self, x):
        n, c, h, w = x.shape
        partial = _gram_partial(x, self.compute_dtype)
        self.G, self.loss = _finalize(partial, self.target, n * c * h * w)
        return x  # forward passes the input through unchanged


def _reference(x, target_feature, compute_dtype=None):
    # pure-JAX reference for validation
    def gram(t):
        n, c, h, w = t.shape
        f = t.reshape(n * c, h * w)
        if compute_dtype is not None:
            f = f.astype(compute_dtype)
        g = jnp.dot(f, f.T, preferred_element_type=jnp.float32)
        return g / float(n * c * h * w)

    gt = gram(target_feature)
    g = gram(x)
    return g, jnp.mean((g - gt) ** 2)


if __name__ == "__main__":
    key = jax.random.PRNGKey(0)
    k_t, k_x, k_y = jax.random.split(key, 3)
    target_feature = jax.random.normal(k_t, (2, 4, 16, 16), dtype=jnp.float32)
    x = jax.random.normal(k_x, (2, 4, 16, 16), dtype=jnp.float32)

    # ---- f32 path (default) ----
    mod = StyleLoss(target_feature)
    out = jax.block_until_ready(mod.forward(x))
    loss = jax.block_until_ready(mod.loss)
    g = jax.block_until_ready(mod.G)

    g_ref, loss_ref = _reference(x, target_feature)
    assert jnp.allclose(out, x), "forward must pass input through unchanged"
    assert jnp.allclose(g, g_ref, atol=1e-5, rtol=1e-5), "gram matrix mismatch"
    assert jnp.allclose(loss, loss_ref, atol=1e-6, rtol=1e-5), "mse loss mismatch"

    # ---- bf16 MXU path (in-kernel cast, f32 accumulation) ----
    mod_bf16 = StyleLoss(target_feature, compute_dtype=jnp.bfloat16)
    out_b = jax.block_until_ready(mod_bf16.forward(x))
    g_b = jax.block_until_ready(mod_bf16.G)
    loss_b = jax.block_until_ready(mod_bf16.loss)

    g_ref_b, loss_ref_b = _reference(x, target_feature, compute_dtype=jnp.bfloat16)
    assert jnp.allclose(out_b, x), "bf16 forward must pass input through unchanged"
    assert jnp.allclose(g_b, g_ref_b, atol=1e-3, rtol=1e-2), "bf16 gram mismatch"
    assert jnp.allclose(loss_b, loss_ref_b, atol=1e-5, rtol=1e-2), "bf16 loss mismatch"

    # ---- multi-tile path: un-padded K, in-kernel tail masking, 2-way K split ----
    y = jax.random.normal(k_y, (1, 8, 20, 55), dtype=jnp.float32)  # K=1100

    g_auto = jax.block_until_ready(gram_matrix_pallas(y))           # 1 tile + mask
    g_split = jax.block_until_ready(gram_matrix_pallas(y, tile_k=128))  # 9 tiles, split
    g_y_ref, _ = _reference(y, y)
    assert jnp.allclose(g_auto, g_y_ref, atol=1e-5, rtol=1e-4), "masked gram mismatch"
    assert jnp.allclose(g_split, g_y_ref, atol=1e-5, rtol=1e-4), "split gram mismatch"

    print("KERNEL_OK")
</pallas_src>

<mosaic_0001>
module attributes {stable_mosaic.version = 11 : i64} {
  func.func @_gram_partial_kernel(%arg0: i32, %arg1: i32, %arg2: memref<8x256xf32, #tpu.memory_space<vmem>>, %arg3: memref<1x8x8xf32, #tpu.memory_space<vmem>>) attributes {dimension_semantics = [#tpu.dimension_semantics<parallel>, #tpu.dimension_semantics<arbitrary>], iteration_bounds = array<i64: 1, 1>, scalar_prefetch = 0 : i64, scratch_operands = 0 : i64, tpu.core_type = #tpu.core_type<tc>, window_params = [{transform_indices = @transform_0, window_bounds = array<i64: 8, 256>}, {transform_indices = @transform_1, window_bounds = array<i64: 1, 8, 8>}]} {
    %c0_i32 = arith.constant 0 : i32
    %0 = arith.cmpi eq, %arg1, %c0_i32 : i32
    %1 = arith.extui %0 : i1 to i32
    %c0_i32_0 = arith.constant 0 : i32
    %2 = arith.cmpi ne, %1, %c0_i32_0 : i32
    scf.if %2 {
      %cst_8 = arith.constant 0.000000e+00 : f32
      %11 = vector.broadcast %cst_8 : f32 to vector<8x8xf32>
      %c0_9 = arith.constant 0 : index
      %c0_10 = arith.constant 0 : index
      %c0_11 = arith.constant 0 : index
      %12 = vector.load %arg3[%c0_9, %c0_10, %c0_11] : memref<1x8x8xf32, #tpu.memory_space<vmem>>, vector<1x8x8xf32>
      %13 = vector.shape_cast %12 : vector<1x8x8xf32> to vector<8x8xf32>
      %14 = vector.shape_cast %11 : vector<8x8xf32> to vector<1x8x8xf32>
      tpu.vector_store %arg3[%c0_9, %c0_10, %c0_11], %14 {strides = array<i32>} : memref<1x8x8xf32, #tpu.memory_space<vmem>>, vector<1x8x8xf32>,
    } else {
    }
    %c0 = arith.constant 0 : index
    %c0_1 = arith.constant 0 : index
    %3 = vector.load %arg2[%c0, %c0_1] : memref<8x256xf32, #tpu.memory_space<vmem>>, vector<8x256xf32>
    %c0_2 = arith.constant 0 : index
    %c0_3 = arith.constant 0 : index
    %c0_4 = arith.constant 0 : index
    %4 = vector.load %arg3[%c0_2, %c0_3, %c0_4] : memref<1x8x8xf32, #tpu.memory_space<vmem>>, vector<1x8x8xf32>
    %5 = vector.shape_cast %4 : vector<1x8x8xf32> to vector<8x8xf32>
    %cst = arith.constant dense<0.000000e+00> : vector<8x8xf32>
    %6 = tpu.matmul %3, %3, %cst {dimension_numbers = #tpu.dot_dimension_numbers<[1], [1], [0], [0], [0, 0, 1, 0], [], []>} : vector<8x256xf32>, vector<8x256xf32>, vector<8x8xf32> -> vector<8x8xf32>
    %7 = arith.addf %5, %6 : vector<8x8xf32>
    %c0_5 = arith.constant 0 : index
    %c0_6 = arith.constant 0 : index
    %c0_7 = arith.constant 0 : index
    %8 = vector.load %arg3[%c0_5, %c0_6, %c0_7] : memref<1x8x8xf32, #tpu.memory_space<vmem>>, vector<1x8x8xf32>
    %9 = vector.shape_cast %8 : vector<1x8x8xf32> to vector<8x8xf32>
    %10 = vector.shape_cast %7 : vector<8x8xf32> to vector<1x8x8xf32>
    tpu.vector_store %arg3[%c0_5, %c0_6, %c0_7], %10 {strides = array<i32>} : memref<1x8x8xf32, #tpu.memory_space<vmem>>, vector<1x8x8xf32>,
    return
  }
  func.func @transform_0(%arg0: i32, %arg1: i32) -> (i32, i32) {
    %c1_i32 = arith.constant 1 : i32
    %0 = arith.muli %arg0, %c1_i32 : i32
    %1 = arith.addi %0, %arg1 : i32
    %c0_i32 = arith.constant 0 : i32
    %c0_i32_0 = arith.constant 0 : i32
    return %c0_i32, %1 : i32, i32
  }
  func.func @transform_1(%arg0: i32, %arg1: i32) -> (i32, i32, i32) {
    %c0_i32 = arith.constant 0 : i32
    %c0_i32_0 = arith.constant 0 : i32
    %c0_i32_1 = arith.constant 0 : i32
    return %arg0, %c0_i32, %c0_i32_0 : i32, i32, i32
  }
}

</mosaic_0001>

<llo_original>
// kernel: tpu_custom_call.1
$region0: #{tpu_custom_call.1}
  #allocation0 [shape = 'u32[]', space=smem, size = 0x4, offset = 0x4, fixed_abs, tag = 'smem constant byte address 0x4 - core index']
  #allocation1 [shape = 'u32[72,128]{1,0:T(1,128)}', space=vmem, size = 0x9000, scoped, tag = 'internal scratch']
  %s0 = inlined_call_operand.hbm [shape: f32[8,256], index: 0, kind: input, shape index: {}]
  %s1 = inlined_call_operand.hbm [shape: f32[1,8,8], index: 1, kind: output, shape index: {}]
  %s2 = sld [smem:[#allocation0]]
  $region22: #{tpu_custom_call.1} parent=0
    _
  %s4 = ssub.s32 1, %s2
  %s5 = scalar_select 0, %s4, %s2
  $region1: #{tpu_custom_call.1} parent=0
    #allocation2 [shape = 'u8[8192]{0}', space=vmem, size = 0x2000, scoped, tag = 'input window, operand 0, single buffered']
    #allocation3 [shape = 's32[1]{0}', space=sflag, size = 0x4, scoped, tag = 'scoped memory for tpu_custom_call.1']
    #allocation4 [shape = 's32[1]{0}', space=sflag, size = 0x4, scoped, tag = 'scoped memory for tpu_custom_call.1']
    #allocation5 [shape = 'u8[4096]{0}', space=vmem, size = 0x1000, scoped, tag = 'output window, operand 0, single buffered']
    %6 = vsyncpa [#allocation3], 0
    %7 = vsyncpa [#allocation4], 0
    // Predicated region
    $region2: #{tpu_custom_call.1} parent=1 // pred_check
      _
    $region3: #{tpu_custom_call.1} parent=1 // pred_check_branch
      %9 = sbr.rel (0) target = $region5
    $region4: #{tpu_custom_call.1} parent=1 // pred_region
      %s10 = sadd.s32 0, 0
      %s11 = smul.u32 2, %s10
      %13 = vsyncadd [#allocation3], 0
      %s14 = smul.addr %s11, 8
      %s15 = scalar_lea.hbm %s0, %s14
      %s17 = sshll.u32 %s15, 4
      %s18 = int_to_ptr.hbm [resolvable:$true] %s17
      %s19 = sshll.u32 [#allocation2], 4
      %s20 = int_to_ptr.vmem [resolvable:$true] %s19
      %22 = dma.hbm_to_vmem [thread:$0]  %s18, 256, %s20, [#allocation3]
    $region5: #{tpu_custom_call.1} parent=1 // pred_fallthru
      _
    // Predicated region
    $region6: #{tpu_custom_call.1} parent=1 // pred_check
      _
    $region7: #{tpu_custom_call.1} parent=1 // pred_check_branch
      %24 = sbr.rel (0) target = $region9
    $region8: #{tpu_custom_call.1} parent=1 // pred_region
      %26 = dma.done [#allocation3], 256
    $region9: #{tpu_custom_call.1} parent=1 // pred_fallthru
      _
    %s27 = sadd.s32 0, 0
    %s28 = smul.u32 2, %s27
    %p29 = scmp.eq.s32.totalorder 0, 0
    // Predicated region
    $region10: #{tpu_custom_call.1} parent=1 // pred_check
      %p30 = pneg %p29
    $region11: #{tpu_custom_call.1} parent=1 // pred_check_branch
      %32 = sbr.rel (%p30) target = $region13
    $region12: #{tpu_custom_call.1} parent=1 // pred_region
      %vm33 = vcmask 64512
      %34 = vst.msk [vmem:[#allocation5] sm:$0xff] %vm33, 0.0
    $region13: #{tpu_custom_call.1} parent=1 // pred_fallthru
      _
    %v35 = vld [vmem:[#allocation2] sm:$0xff]
    %v36 = vld [vmem:[#allocation2 + $0x8] sm:$0xff]
    %v37 = vld [vmem:[#allocation5] sm:$0xff]
    %38 = vmatpush.xpose.msra.mxu0 0.0
    %39 = vmatpush.xpose.msra.mxu0 0.0
    %40 = vmatpush.xpose.msra.mxu0 0.0
    %41 = vmatpush.xpose.msra.mxu0 0.0
    %42 = vmatpush.xpose.msra.mxu0 0.0
    %43 = vmatpush.xpose.msra.mxu0 0.0
    %44 = vmatpush.xpose.msra.mxu0 0.0
    %45 = vmatpush.xpose.msra.mxu0 0.0
    %46 = vmatpush.xpose.msra.mxu0 0.0
    %47 = vmatpush.xpose.msra.mxu0 0.0
    %48 = vmatpush.xpose.msra.mxu0 0.0
    %49 = vmatpush.xpose.msra.mxu0 0.0
    %50 = vmatpush.xpose.msra.mxu0 0.0
    %51 = vmatpush.xpose.msra.mxu0 0.0
    %52 = vmatpush.xpose.msra.mxu0 0.0
    %53 = vmatpush.xpose.msra.mxu0 %v35
    %54 = vmatmul.f32.gmra.mxu0 %v35
    %v55 = vpop.f32.mrf.mxu0
    %v56 = vadd.f32 0.0, %v55
    %57 = vdwg.mxu0
    %58 = vmatpush.xpose.msra.mxu0 0.0
    %59 = vmatpush.xpose.msra.mxu0 0.0
    %60 = vmatpush.xpose.msra.mxu0 0.0
    %61 = vmatpush.xpose.msra.mxu0 0.0
    %62 = vmatpush.xpose.msra.mxu0 0.0
    %63 = vmatpush.xpose.msra.mxu0 0.0
    %64 = vmatpush.xpose.msra.mxu0 0.0
    %65 = vmatpush.xpose.msra.mxu0 0.0
    %66 = vmatpush.xpose.msra.mxu0 0.0
    %67 = vmatpush.xpose.msra.mxu0 0.0
    %68 = vmatpush.xpose.msra.mxu0 0.0
    %69 = vmatpush.xpose.msra.mxu0 0.0
    %70 = vmatpush.xpose.msra.mxu0 0.0
    %71 = vmatpush.xpose.msra.mxu0 0.0
    %72 = vmatpush.xpose.msra.mxu0 0.0
    %73 = vmatpush.xpose.msra.mxu0 %v36
    %74 = vmatmul.f32.gmra.mxu0 %v36
    %v75 = vpop.f32.mrf.mxu0
    %v76 = vadd.f32 %v56, %v75
    %77 = vdwg.mxu0
    %v78 = vadd.f32 %v37, %v76
    %vm79 = vcmask 64512
    %80 = vst.msk [vmem:[#allocation5] sm:$0xff] %vm79, %v78
    // Predicated region
    $region14: #{tpu_custom_call.1} parent=1 // pred_check
      _
    $region15: #{tpu_custom_call.1} parent=1 // pred_check_branch
      %82 = sbr.rel (0) target = $region17
    $region16: #{tpu_custom_call.1} parent=1 // pred_region
      %84 = vsyncadd [#allocation4], 0
      %s86 = sshll.u32 [#allocation5], 4
      %s87 = int_to_ptr.vmem [resolvable:$true] %s86
      %s88 = sshll.u32 %s1, 4
      %s89 = int_to_ptr.hbm [resolvable:$true] %s88
      %91 = dma.vmem_to_hbm [thread:$0]  %s87, 128, %s89, [#allocation4]
    $region17: #{tpu_custom_call.1} parent=1 // pred_fallthru
      _
    // Predicated region
    $region18: #{tpu_custom_call.1} parent=1 // pred_check
      _
    $region19: #{tpu_custom_call.1} parent=1 // pred_check_branch
      %93 = sbr.rel (0) target = $region21
    $region20: #{tpu_custom_call.1} parent=1 // pred_region
      %95 = dma.done [#allocation4], 128
    $region21: #{tpu_custom_call.1} parent=1 // pred_fallthru
      _
    %96 = vsyncpa [#allocation3], 1
    %97 = vsyncpa [#allocation4], 1

</llo_original>
